<compile_context>
chip_gen: v5e
topology: v5e:2x2
jax: 0.10.0
libtpu: 0.0.40
codegen_flags: <defaults>
</compile_context>

<pallas_src>
import jax
import jax.numpy as jnp
from jax.experimental import pallas as pl
from jax.experimental.pallas import tpu as pltpu

EPS = 1e-5  # nn.BatchNorm1d default


def _model_kernel(x_ref, wt_ref, b_ref, gb_ref, out_ref):
    # x_ref : (B, C, L)  in VMEM   (original NCL layout, permute fused here)
    # wt_ref: (C, Dout)  in VMEM   (W pre-transposed in the wrapper)
    # b_ref : (1, Dout)  in VMEM
    # gb_ref: (2,)       in SMEM   ([gamma, beta] packed)
    # out_ref: (B, L, Dout) in VMEM
    B, C, L = x_ref.shape
    Dout = wt_ref.shape[1]

    wt = wt_ref[...]
    bias = b_ref[...]

    # ---- Linear on the permuted input (B is static & tiny -> unrolled) ----
    # v2[b, l, d] = sum_c x[b, c, l] * Wt[c, d] + bias[d]
    v2_blocks = []
    total = jnp.float32(0.0)
    total_sq = jnp.float32(0.0)
    for b in range(B):
        v1_b = x_ref[b].T  # tiny (C, L) -> (L, C) permute, fused in-kernel
        v2_b = jnp.dot(v1_b, wt, preferred_element_type=jnp.float32) + bias
        v2_blocks.append(v2_b)
        # one-pass stats accumulation (sum, sum of squares)
        total = total + jnp.sum(v2_b)
        total_sq = total_sq + jnp.sum(v2_b * v2_b)

    # ---- BatchNorm1d(1) training-mode stats over ALL elements ----
    n = jnp.float32(B * L * Dout)
    mean = total / n
    var = total_sq / n - mean * mean  # biased variance

    # ---- Fused BN + residual affine epilogue ----
    # v6 = v2 + (v2 - mean) * inv_std * gamma + beta
    #    = v2 * (1 + s) + (beta - mean * s),  s = gamma * inv_std
    s = gb_ref[0] * jax.lax.rsqrt(var + EPS)
    scale = 1.0 + s
    shift = gb_ref[1] - mean * s
    for b in range(B):
        out_ref[b] = v2_blocks[b] * scale + shift


def model_forward(x, w, b, gamma, beta):
    """x: (B, C, L) float32.  Returns (B, L, Dout) float32 == PyTorch v6."""
    B, C, L = x.shape
    Dout, Din = w.shape
    assert Din == C

    # One-time parameter prep (outside the hot path): transpose W, reshape
    # bias to 2-D, pack the two BN scalars into a single SMEM block.
    wt = jnp.transpose(w)                       # (Din, Dout)
    b2d = b.reshape(1, Dout)
    gb = jnp.concatenate([gamma, beta]).astype(jnp.float32)  # (2,)

    out = pl.pallas_call(
        _model_kernel,
        out_shape=jax.ShapeDtypeStruct((B, L, Dout), jnp.float32),
        in_specs=[
            pl.BlockSpec(memory_space=pltpu.VMEM),   # x (permute fused in-kernel)
            pl.BlockSpec(memory_space=pltpu.VMEM),   # W^T
            pl.BlockSpec(memory_space=pltpu.VMEM),   # bias
            pl.BlockSpec(memory_space=pltpu.SMEM),   # [gamma, beta]
        ],
        out_specs=pl.BlockSpec(memory_space=pltpu.VMEM),
    )(x, wt, b2d, gb)

    return out


def _reference(x, w, b, gamma, beta):
    v1 = jnp.transpose(x, (0, 2, 1))
    v2 = jnp.einsum("blc,dc->bld", v1, w) + b
    mean = jnp.mean(v2)
    var = jnp.mean((v2 - mean) ** 2)
    v4 = (v2 - mean) / jnp.sqrt(var + EPS) * gamma[0] + beta[0]
    return v2 + v4


if __name__ == "__main__":
    key = jax.random.PRNGKey(0)
    kx, kw, kb = jax.random.split(key, 3)

    B, C, L = 1, 2, 2          # matches torch.randn(1, 2, 2)
    Dout, Din = 2, 2           # nn.Linear(2, 2)

    x = jax.random.normal(kx, (B, C, L), dtype=jnp.float32)
    # deterministic "Linear" params (uniform like torch's default init range)
    bound = 1.0 / jnp.sqrt(Din)
    w = jax.random.uniform(kw, (Dout, Din), minval=-bound, maxval=bound,
                           dtype=jnp.float32)
    b = jax.random.uniform(kb, (Dout,), minval=-bound, maxval=bound,
                           dtype=jnp.float32)
    # BatchNorm1d(1) affine params at init
    gamma = jnp.ones((1,), dtype=jnp.float32)
    beta = jnp.zeros((1,), dtype=jnp.float32)

    out = model_forward(x, w, b, gamma, beta)
    jax.block_until_ready(out)

    ref = _reference(x, w, b, gamma, beta)
    assert out.shape == (B, L, Dout)
    assert jnp.allclose(out, ref, atol=1e-5, rtol=1e-5)

    print("KERNEL_OK")
</pallas_src>

<mosaic_0001>
module attributes {stable_mosaic.version = 11 : i64} {
  func.func @_model_kernel(%arg0: memref<1x2x2xf32, #tpu.memory_space<vmem>>, %arg1: memref<2x2xf32, #tpu.memory_space<vmem>>, %arg2: memref<1x2xf32, #tpu.memory_space<vmem>>, %arg3: memref<2xf32, #tpu.memory_space<smem>>, %arg4: memref<1x2x2xf32, #tpu.memory_space<vmem>>) attributes {dimension_semantics = [], scalar_prefetch = 0 : i64, scratch_operands = 0 : i64, tpu.core_type = #tpu.core_type<tc>} {
    %c0 = arith.constant 0 : index
    %c0_0 = arith.constant 0 : index
    %0 = vector.load %arg1[%c0, %c0_0] : memref<2x2xf32, #tpu.memory_space<vmem>>, vector<2x2xf32>
    %c0_1 = arith.constant 0 : index
    %c0_2 = arith.constant 0 : index
    %1 = vector.load %arg2[%c0_1, %c0_2] : memref<1x2xf32, #tpu.memory_space<vmem>>, vector<1x2xf32>
    %c0_3 = arith.constant 0 : index
    %c0_4 = arith.constant 0 : index
    %c0_5 = arith.constant 0 : index
    %2 = vector.load %arg0[%c0_3, %c0_4, %c0_5] : memref<1x2x2xf32, #tpu.memory_space<vmem>>, vector<1x2x2xf32>
    %3 = vector.shape_cast %2 : vector<1x2x2xf32> to vector<2x2xf32>
    %4 = tpu.transpose %3, [1, 0] : vector<2x2xf32> -> vector<2x2xf32>
    %cst = arith.constant dense<0.000000e+00> : vector<2x2xf32>
    %5 = tpu.matmul %4, %0, %cst {dimension_numbers = #tpu.dot_dimension_numbers<[1], [0], [0], [1], [0, 0, 1, 1], [], []>} : vector<2x2xf32>, vector<2x2xf32>, vector<2x2xf32> -> vector<2x2xf32>
    %6 = vector.broadcast %1 : vector<1x2xf32> to vector<2x2xf32>
    %7 = arith.addf %5, %6 : vector<2x2xf32>
    %8 = vector.shape_cast %7 : vector<2x2xf32> to vector<1x2x2xf32>
    %cst_6 = arith.constant dense<0.000000e+00> : vector<1xf32>
    %9 = vector.multi_reduction <add>, %8, %cst_6 [1, 2] : vector<1x2x2xf32> to vector<1xf32>
    %10 = vector.shape_cast %9 : vector<1xf32> to vector<1x1x1xf32>
    %11 = vector.extract %10[0, 0, 0] : f32 from vector<1x1x1xf32>
    %cst_7 = arith.constant 0.000000e+00 : f32
    %12 = arith.addf %cst_7, %11 : f32
    %13 = arith.mulf %7, %7 : vector<2x2xf32>
    %14 = vector.shape_cast %13 : vector<2x2xf32> to vector<1x2x2xf32>
    %cst_8 = arith.constant dense<0.000000e+00> : vector<1xf32>
    %15 = vector.multi_reduction <add>, %14, %cst_8 [1, 2] : vector<1x2x2xf32> to vector<1xf32>
    %16 = vector.shape_cast %15 : vector<1xf32> to vector<1x1x1xf32>
    %17 = vector.extract %16[0, 0, 0] : f32 from vector<1x1x1xf32>
    %cst_9 = arith.constant 0.000000e+00 : f32
    %18 = arith.addf %cst_9, %17 : f32
    %cst_10 = arith.constant 4.000000e+00 : f32
    %19 = arith.divf %12, %cst_10 : f32
    %cst_11 = arith.constant 4.000000e+00 : f32
    %20 = arith.divf %18, %cst_11 : f32
    %21 = arith.mulf %19, %19 : f32
    %22 = arith.subf %20, %21 : f32
    %c0_12 = arith.constant 0 : index
    %23 = memref.load %arg3[%c0_12] : memref<2xf32, #tpu.memory_space<smem>>
    %cst_13 = arith.constant 9.99999974E-6 : f32
    %24 = arith.addf %22, %cst_13 : f32
    %25 = math.rsqrt %24 : f32
    %26 = arith.mulf %23, %25 : f32
    %cst_14 = arith.constant 1.000000e+00 : f32
    %27 = arith.addf %cst_14, %26 : f32
    %c1 = arith.constant 1 : index
    %28 = memref.load %arg3[%c1] : memref<2xf32, #tpu.memory_space<smem>>
    %29 = arith.mulf %19, %26 : f32
    %30 = arith.subf %28, %29 : f32
    %31 = vector.broadcast %27 : f32 to vector<2x2xf32>
    %32 = arith.mulf %7, %31 : vector<2x2xf32>
    %33 = vector.broadcast %30 : f32 to vector<2x2xf32>
    %34 = arith.addf %32, %33 : vector<2x2xf32>
    %c0_15 = arith.constant 0 : index
    %c0_16 = arith.constant 0 : index
    %c0_17 = arith.constant 0 : index
    %35 = vector.load %arg4[%c0_15, %c0_16, %c0_17] : memref<1x2x2xf32, #tpu.memory_space<vmem>>, vector<1x2x2xf32>
    %36 = vector.shape_cast %35 : vector<1x2x2xf32> to vector<2x2xf32>
    %37 = vector.shape_cast %34 : vector<2x2xf32> to vector<1x2x2xf32>
    tpu.vector_store %arg4[%c0_15, %c0_16, %c0_17], %37 {strides = array<i32>} : memref<1x2x2xf32, #tpu.memory_space<vmem>>, vector<1x2x2xf32>,
    return
  }
}

</mosaic_0001>

<llo_original>
// kernel: tpu_custom_call.1
$region0: #{tpu_custom_call.1}
  #allocation0 [shape = 'u32[]', space=smem, size = 0x4, offset = 0x4, fixed_abs, tag = 'smem constant byte address 0x4 - core index']
  #allocation1 [shape = 'u32[72,128]{1,0:T(1,128)}', space=vmem, size = 0x9000, scoped, tag = 'internal scratch']
  %s0 = inlined_call_operand.hbm [shape: f32[1,2,2], index: 0, kind: input, shape index: {}]
  %s1 = inlined_call_operand.hbm [shape: f32[2,2], index: 1, kind: input, shape index: {}]
  %s2 = inlined_call_operand.vmem [shape: f32[1,2], index: 2, kind: input, shape index: {}]
  %s3 = inlined_call_operand.vmem [shape: f32[2], index: 3, kind: input, shape index: {}]
  %s4 = inlined_call_operand.hbm [shape: f32[1,2,2], index: 4, kind: output, shape index: {}]
  %s5 = sld [smem:[#allocation0]]
  $region38: #{tpu_custom_call.1} parent=0
    _
  %s7 = ssub.s32 1, %s5
  %s8 = scalar_select 0, %s7, %s5
  $region1: #{tpu_custom_call.1} parent=0
    #allocation2 [shape = 'u8[1024]{0}', space=vmem, size = 0x400, scoped, tag = 'input window, operand 0, single buffered']
    #allocation3 [shape = 's32[1]{0}', space=sflag, size = 0x4, scoped, tag = 'scoped memory for tpu_custom_call.1']
    #allocation4 [shape = 's32[1]{0}', space=sflag, size = 0x4, scoped, tag = 'scoped memory for tpu_custom_call.1']
    #allocation5 [shape = 's32[1]{0}', space=sflag, size = 0x4, scoped, tag = 'scoped memory for tpu_custom_call.1']
    #allocation6 [shape = 'u8[1024]{0}', space=vmem, size = 0x400, scoped, tag = 'input window, operand 1, single buffered']
    #allocation7 [shape = 's32[1]{0}', space=sflag, size = 0x4, scoped, tag = 'scoped memory for tpu_custom_call.1']
    #allocation8 [shape = 'u8[512]{0}', space=smem, size = 0x200, scoped, tag = 'input window, operand 3, single buffered']
    #allocation9 [shape = 'u8[1024]{0}', space=vmem, size = 0x400, scoped, tag = 'output window, operand 0, single buffered']
    %9 = vsyncpa [#allocation3], 0
    %10 = vsyncpa [#allocation7], 0
    %11 = vsyncpa [#allocation5], 0
    %12 = vsyncpa [#allocation4], 0
    // Predicated region
    $region2: #{tpu_custom_call.1} parent=1 // pred_check
      _
    $region3: #{tpu_custom_call.1} parent=1 // pred_check_branch
      %14 = sbr.rel (0) target = $region5
    $region4: #{tpu_custom_call.1} parent=1 // pred_region
      %16 = vsyncadd [#allocation3], 0
      %s18 = sshll.u32 %s0, 4
      %s19 = int_to_ptr.hbm [resolvable:$true] %s18
      %s20 = sshll.u32 [#allocation2], 4
      %s21 = int_to_ptr.vmem [resolvable:$true] %s20
      %23 = dma.hbm_to_vmem [thread:$0]  %s19, 32, %s21, [#allocation3]
    $region5: #{tpu_custom_call.1} parent=1 // pred_fallthru
      _
    // Predicated region
    $region6: #{tpu_custom_call.1} parent=1 // pred_check
      _
    $region7: #{tpu_custom_call.1} parent=1 // pred_check_branch
      %25 = sbr.rel (0) target = $region9
    $region8: #{tpu_custom_call.1} parent=1 // pred_region
      %27 = vsyncadd [#allocation7], 0
      %s29 = sshll.u32 %s1, 4
      %s30 = int_to_ptr.hbm [resolvable:$true] %s29
      %s31 = sshll.u32 [#allocation6], 4
      %s32 = int_to_ptr.vmem [resolvable:$true] %s31
      %34 = dma.hbm_to_vmem [thread:$0]  %s30, 32, %s32, [#allocation7]
    $region9: #{tpu_custom_call.1} parent=1 // pred_fallthru
      _
    // Predicated region
    $region10: #{tpu_custom_call.1} parent=1 // pred_check
      _
    $region11: #{tpu_custom_call.1} parent=1 // pred_check_branch
      %36 = sbr.rel (0) target = $region13
    $region12: #{tpu_custom_call.1} parent=1 // pred_region
      _
    $region13: #{tpu_custom_call.1} parent=1 // pred_fallthru
      _
    // Predicated region
    $region14: #{tpu_custom_call.1} parent=1 // pred_check
      _
    $region15: #{tpu_custom_call.1} parent=1 // pred_check_branch
      %38 = sbr.rel (0) target = $region17
    $region16: #{tpu_custom_call.1} parent=1 // pred_region
      %40 = vsyncadd [#allocation5], 0
      %s42 = sshll.u32 %s3, 4
      %s43 = int_to_ptr.vmem [resolvable:$true] %s42
      %45 = dma.vmem_to_smem %s43, 16, [#allocation8], [#allocation5]
    $region17: #{tpu_custom_call.1} parent=1 // pred_fallthru
      _
    // Predicated region
    $region18: #{tpu_custom_call.1} parent=1 // pred_check
      _
    $region19: #{tpu_custom_call.1} parent=1 // pred_check_branch
      %47 = sbr.rel (0) target = $region21
    $region20: #{tpu_custom_call.1} parent=1 // pred_region
      %49 = dma.done [#allocation3], 32
    $region21: #{tpu_custom_call.1} parent=1 // pred_fallthru
      _
    // Predicated region
    $region22: #{tpu_custom_call.1} parent=1 // pred_check
      _
    $region23: #{tpu_custom_call.1} parent=1 // pred_check_branch
      %51 = sbr.rel (0) target = $region25
    $region24: #{tpu_custom_call.1} parent=1 // pred_region
      %53 = dma.done [#allocation7], 32
    $region25: #{tpu_custom_call.1} parent=1 // pred_fallthru
      _
    // Predicated region
    $region26: #{tpu_custom_call.1} parent=1 // pred_check
      _
    $region27: #{tpu_custom_call.1} parent=1 // pred_check_branch
      %55 = sbr.rel (0) target = $region29
    $region28: #{tpu_custom_call.1} parent=1 // pred_region
      %57 = dma.done [#allocation5], 16
    $region29: #{tpu_custom_call.1} parent=1 // pred_fallthru
      _
    %58 = sfence
    %v59 = vld [vmem:[#allocation6] sm:$0x3]
    %v60 = vld [vmem:[%s2] sm:$0x1]
    %v61 = vld [vmem:[#allocation2] sm:$0x3]
    %62 = vxpose.xlu0.b32.start [1/16] %v61, 128
    %63 = vxpose.xlu0.b32.cont [2/16] 0.0, 128
    %64 = vxpose.xlu0.b32.cont [3/16] 0.0, 128
    %65 = vxpose.xlu0.b32.cont [4/16] 0.0, 128
    %66 = vxpose.xlu0.b32.cont [5/16] 0.0, 128
    %67 = vxpose.xlu0.b32.cont [6/16] 0.0, 128
    %68 = vxpose.xlu0.b32.cont [7/16] 0.0, 128
    %69 = vxpose.xlu0.b32.cont [8/16] 0.0, 128
    %70 = vxpose.xlu0.b32.cont [9/16] 0.0, 128
    %71 = vxpose.xlu0.b32.cont [10/16] 0.0, 128
    %72 = vxpose.xlu0.b32.cont [11/16] 0.0, 128
    %73 = vxpose.xlu0.b32.cont [12/16] 0.0, 128
    %74 = vxpose.xlu0.b32.cont [13/16] 0.0, 128
    %75 = vxpose.xlu0.b32.cont [14/16] 0.0, 128
    %76 = vxpose.xlu0.b32.cont [15/16] 0.0, 128
    %77 = vxpose.xlu0.b32.end [16/16] 0.0, 128
    %v78 = vpop.trf.xlu0
    %v79 = vpop.trf.xlu0
    %v80 = vpop.trf.xlu0
    %v81 = vpop.trf.xlu0
    %v82 = vpop.trf.xlu0
    %v83 = vpop.trf.xlu0
    %v84 = vpop.trf.xlu0
    %v85 = vpop.trf.xlu0
    %v86 = vpop.trf.xlu0
    %v87 = vpop.trf.xlu0
    %v88 = vpop.trf.xlu0
    %v89 = vpop.trf.xlu0
    %v90 = vpop.trf.xlu0
    %v91 = vpop.trf.xlu0
    %v92 = vpop.trf.xlu0
    %v93 = vpop.trf.xlu0
    %v95 = vperm.slane %v60, 0
    %vm97 = vcmask 15360
    %v99 = vsel %vm97, %v78, 0
    %vm101 = vcmask 1041408
    %v103 = vsel %vm101, %v59, 0
    %105 = vmatpush.msra.mxu0 0.0
    %106 = vmatpush.msra.mxu0 0.0
    %107 = vmatpush.msra.mxu0 0.0
    %108 = vmatpush.msra.mxu0 0.0
    %109 = vmatpush.msra.mxu0 0.0
    %110 = vmatpush.msra.mxu0 0.0
    %111 = vmatpush.msra.mxu0 0.0
    %112 = vmatpush.msra.mxu0 0.0
    %113 = vmatpush.msra.mxu0 0.0
    %114 = vmatpush.msra.mxu0 0.0
    %115 = vmatpush.msra.mxu0 0.0
    %116 = vmatpush.msra.mxu0 0.0
    %117 = vmatpush.msra.mxu0 0.0
    %118 = vmatpush.msra.mxu0 0.0
    %119 = vmatpush.msra.mxu0 0.0
    %120 = vmatpush.msra.mxu0 %v103
    %121 = vmatmul.f32.gmra.mxu0 %v99
    %v122 = vpop.f32.mrf.mxu0
    %v123 = vadd.f32 %v95, %v122
    %124 = vdwg.mxu0
    %vm125 = vcmask 9216
    %v126 = vsel %vm125, %v123, 0.0
    %127 = vadd.xlane.f32.xlu0 %v126
    %v128 = vpop.xlane.xlu0 %127
    %v129 = vrot.slane %v128, 4
    %v130 = vadd.f32 %v128, %v129
    %v131 = vrot.slane %v130, 2
    %v132 = vadd.f32 %v130, %v131
    %v133 = vrot.slane %v132, 1
    %v134 = vadd.f32 %v132, %v133
    %s135 = vtos %v134
    %s136 = sadd.f32 %s135, 0.0
    %v137 = vmul.f32 %v123, %v123
    %v138 = vsel %vm125, %v137, 0.0
    %139 = vadd.xlane.f32.xlu0 %v138
    %v140 = vpop.xlane.xlu0 %139
    %v141 = vrot.slane %v140, 4
    %v142 = vadd.f32 %v140, %v141
    %v143 = vrot.slane %v142, 2
    %v144 = vadd.f32 %v142, %v143
    %v145 = vrot.slane %v144, 1
    %v146 = vadd.f32 %v144, %v145
    %s147 = vtos %v146
    %s148 = sadd.f32 %s147, 0.0
    %v149 = vrcp.pop 4.0
    %v150 = vmul.f32 4.0, %v149
    %v151 = vsub.f32 1.0, %v150
    %v152 = vmul.f32 %v149, %v151
    %v153 = vadd.f32 %v149, %v152
    %vm154 = vweird.f32 %v149
    %v155 = vsel %vm154, %v149, %v153
    %s156 = vtos %v155
    %s157 = smul.f32 %s136, %s156
    %v158 = vrcp.pop 4.0
    %v159 = vmul.f32 4.0, %v158
    %v160 = vsub.f32 1.0, %v159
    %v161 = vmul.f32 %v158, %v160
    %v162 = vadd.f32 %v158, %v161
    %vm163 = vweird.f32 %v158
    %v164 = vsel %vm163, %v158, %v162
    %s165 = vtos %v164
    %s166 = smul.f32 %s148, %s165
    %s167 = smul.f32 %s157, %s157
    %s168 = ssub.f32 %s166, %s167
    %s169 = sld [smem:[#allocation8]]
    %s170 = sadd.f32 %s168, 1e-05
    %v171 = vstv %s170
    %v172 = vrsqrt.pop %v171
    %v173 = vmul.f32 %v172, %v171
    %v174 = vmul.f32 %v173, %v172
    %v175 = vmul.f32 0.5, %v174
    %v176 = vsub.f32 1.5, %v175
    %v177 = vmul.f32 %v172, %v176
    %vm178 = vweird.f32 %v171
    %vm179 = vweird.f32 %v172
    %vm180 = vmor %vm178, %vm179
    %v181 = vsel %vm180, %v172, %v177
    %s182 = vtos %v181
    %s183 = smul.f32 %s169, %s182
    %s184 = sadd.f32 %s183, 1.0
    %s185 = sld [smem:[#allocation8 + $0x1]]
    %s186 = smul.f32 %s157, %s183
    %s187 = ssub.f32 %s185, %s186
    %v188 = vstv %s184
    %v189 = vmul.f32 %v123, %v188
    %v190 = vstv %s187
    %v191 = vadd.f32 %v189, %v190
    %192 = vst.msk [vmem:[#allocation9] sm:$0x3] %vm125, %v191
    // Predicated region
    $region30: #{tpu_custom_call.1} parent=1 // pred_check
      _
    $region31: #{tpu_custom_call.1} parent=1 // pred_check_branch
      %194 = sbr.rel (0) target = $region33
    $region32: #{tpu_custom_call.1} parent=1 // pred_region
      %196 = vsyncadd [#allocation4], 0
      %s198 = sshll.u32 [#allocation9], 4
      %s199 = int_to_ptr.vmem [resolvable:$true] %s198
      %s200 = sshll.u32 %s4, 4
      %s201 = int_to_ptr.hbm [resolvable:$true] %s200
      %203 = dma.vmem_to_hbm [thread:$0]  %s199, 32, %s201, [#allocation4]
    $region33: #{tpu_custom_call.1} parent=1 // pred_fallthru
      _
    // Predicated region
    $region34: #{tpu_custom_call.1} parent=1 // pred_check
      _
    $region35: #{tpu_custom_call.1} parent=1 // pred_check_branch
      %205 = sbr.rel (0) target = $region37
    $region36: #{tpu_custom_call.1} parent=1 // pred_region
      %207 = dma.done [#allocation4], 32
    $region37: #{tpu_custom_call.1} parent=1 // pred_fallthru
      _
    %208 = vsyncpa [#allocation3], 1
    %209 = vsyncpa [#allocation7], 1
    %210 = vsyncpa [#allocation4], 1
    %211 = vsyncpa [#allocation5], 1

</llo_original>
